<compile_context>
chip_gen: v7x
topology: tpu7x:2x2x1
jax: 0.10.0
libtpu: 0.0.40
codegen_flags: <defaults>
</compile_context>

<pallas_src>
import functools

import jax
import jax.numpy as jnp
from jax.experimental import pallas as pl
from jax.experimental.pallas import tpu as pltpu


# ---------------------------------------------------------------------------
# Kernel
# ---------------------------------------------------------------------------
def _rope_kernel(tab_ref, q_ref, k_ref, qo_ref, ko_ref):
    cos = tab_ref[0]          # (TS, D)  f32
    sin_signed = tab_ref[1]   # (TS, D)  f32, rotate_half's sign folded in
    half = q_ref.shape[-1] // 2

    def apply(x_ref, o_ref):
        x = x_ref[...].astype(jnp.float32)                 # (TBH, TS, D)
        # rotate_half(x) * sin == roll(x, D//2) * sin_signed  (roll -> XLU slot)
        rot = pltpu.roll(x, shift=half, axis=x.ndim - 1)
        # cos / sin_signed broadcast over the fused-head axis (trailing dims align)
        o_ref[...] = (x * cos + rot * sin_signed).astype(o_ref.dtype)

    apply(q_ref, qo_ref)
    apply(k_ref, ko_ref)


# ---------------------------------------------------------------------------
# Tables (the module's only "parameters": the inv_freq buffer)
# ---------------------------------------------------------------------------
def _cos_sin_tables(seq_len: int, dim: int):
    # inv_freq = 1 / 10000^(arange(0, dim, 2)/dim)
    inv_freq = 1.0 / (10000.0 ** (jnp.arange(0, dim, 2, dtype=jnp.float32) / dim))
    t = jnp.arange(seq_len, dtype=jnp.float32)
    freqs = jnp.outer(t, inv_freq)                      # (S, D/2)
    emb = jnp.concatenate([freqs, freqs], axis=-1)      # (S, D)
    return jnp.cos(emb), jnp.sin(emb)


# ---------------------------------------------------------------------------
# Chip-aware budgets
# ---------------------------------------------------------------------------
def _chip_budget(target_block_bytes):
    """Returns (target_block_bytes, vmem_limit_bytes)."""
    vmem_cap = 128 << 20
    try:
        vmem_cap = int(pltpu.get_tpu_info().vmem_capacity_bytes)
    except Exception:
        pass  # fall back to the conservative large-VMEM assumption below
    if vmem_cap <= (64 << 20):          # v7x-class: 64 MiB VMEM per TensorCore
        tgt, limit = 4 << 20, 48 << 20
    else:                               # v5e / v6e: 128 MiB physical VMEM
        tgt, limit = 4 << 20, 64 << 20
    if target_block_bytes is not None:
        tgt = int(target_block_bytes)
    return tgt, limit


# ---------------------------------------------------------------------------
# Tile picker
# ---------------------------------------------------------------------------
def _pick_tiles(bh: int, s: int, d: int, itemsize: int, target_block_bytes: int):
    # dtype-aware packed-sublane multiple: f32 -> 8, bf16 -> 16, int8/fp8 -> 32
    sub = max(8, 32 // itemsize)
    row_bytes = d * itemsize            # one q/k row
    tab_row_bytes = 2 * d * 4           # one (cos, sin) f32 row pair

    # ---- seq tile: biggest aligned TS whose q block (tbh=1) AND table block fit
    max_ts = min(s,
                 max(1, target_block_bytes // row_bytes),
                 max(1, target_block_bytes // tab_row_bytes))
    if max_ts >= s:
        ts = s                                        # whole sequence in one slab
    else:
        ts = max(sub, (max_ts // sub) * sub)          # aligned to packed sublanes
        # prefer an exact divisor of S (no padded partial block) when one exists
        # that is at least half of the aligned maximum
        best_div = 0
        for cand in range(sub, ts + 1, sub):
            if s % cand == 0:
                best_div = cand
        if best_div * 2 >= ts:
            ts = best_div
        ts = min(ts, s)
    n_s = pl.cdiv(s, ts)                              # partial last block allowed

    # ---- fused-head tile: largest divisor of BH whose block fits the target and
    # keeps the TOTAL grid >= 2 steps (feeds both v7x TCs; harmless on 1-TC chips)
    tbh = 1
    for cand in range(1, bh + 1):
        if bh % cand:
            continue
        fits = cand * ts * row_bytes <= target_block_bytes
        steps = (bh // cand) * n_s
        if fits and (steps >= 2 or bh * n_s == 1):
            tbh = cand
    return tbh, ts, n_s


# ---------------------------------------------------------------------------
# Wrapper
# ---------------------------------------------------------------------------
@functools.partial(jax.jit, static_argnames=("target_block_bytes",))
def rotary_embedding(q: jax.Array, k: jax.Array, target_block_bytes=None):
    """q, k: [B, H, S, D].  Returns RoPE-rotated (q, k), same shapes/dtypes."""
    B, H, S, D = q.shape
    assert k.shape == (B, H, S, D), "kernel assumes q and k share seq length"
    assert k.dtype == q.dtype, "kernel assumes q and k share dtype"
    assert D % 2 == 0

    cos, sin = _cos_sin_tables(S, D)
    # Fold rotate_half's sign into sin so the kernel only needs a single roll,
    # and pack cos/sin into ONE table stream (2, S, D).
    sin_signed = jnp.concatenate([-sin[:, : D // 2], sin[:, D // 2:]], axis=-1)
    tab = jnp.stack([cos, sin_signed], axis=0)            # (2, S, D) f32

    BH = B * H
    q2 = q.reshape(BH, S, D)
    k2 = k.reshape(BH, S, D)

    tgt_bytes, vmem_limit = _chip_budget(target_block_bytes)
    tbh, ts, n_s = _pick_tiles(BH, S, D, q2.dtype.itemsize, tgt_bytes)
    n_bh = BH // tbh

    # Grid: seq outer, fused-head INNER -> the table block index (0, j, 0) is
    # constant across consecutive steps and its DMA is skipped.
    qk_spec = pl.BlockSpec((tbh, ts, D), lambda j, i: (i, j, 0))
    tab_spec = pl.BlockSpec((2, ts, D), lambda j, i: (0, j, 0))

    grid_spec = pltpu.PrefetchScalarGridSpec(
        num_scalar_prefetch=0,
        grid=(n_s, n_bh),
        in_specs=[tab_spec, qk_spec, qk_spec],
        out_specs=[qk_spec, qk_spec],
    )

    qo, ko = pl.pallas_call(
        _rope_kernel,
        out_shape=(
            jax.ShapeDtypeStruct((BH, S, D), q.dtype),
            jax.ShapeDtypeStruct((BH, S, D), k.dtype),
        ),
        grid_spec=grid_spec,
        # Rotated q/k overwrite the (reshaped) inputs in place where possible.
        input_output_aliases={1: 0, 2: 1},
        compiler_params=pltpu.CompilerParams(
            dimension_semantics=("parallel", "parallel"),
            # 2 buffers x (4 q/k streams x <=4 MiB + <=4 MiB table) <= ~40 MiB,
            # inside 48 MiB (v7x 64-MiB VMEM) / 64 MiB (v5e/v6e 128-MiB VMEM).
            vmem_limit_bytes=vmem_limit,
        ),
    )(tab, q2, k2)

    return qo.reshape(B, H, S, D), ko.reshape(B, H, S, D)


# ---------------------------------------------------------------------------
# Pure-JAX reference mirroring the PyTorch module exactly
# ---------------------------------------------------------------------------
def _rope_reference(q, k):
    B, H, S, D = k.shape
    cos, sin = _cos_sin_tables(S, D)
    cos = cos[None, None, :, :]
    sin = sin[None, None, :, :]

    def apply(x):
        c = cos[:, :, : x.shape[-2], :]
        s = sin[:, :, : x.shape[-2], :]
        x1, x2 = jnp.split(x, 2, axis=-1)
        rot = jnp.concatenate([-x2, x1], axis=-1)
        return x * c + rot * s

    return apply(q), apply(k)


if __name__ == "__main__":
    key = jax.random.PRNGKey(0)
    kq, kk, kq2, kk2 = jax.random.split(key, 4)

    # LMBaseAttention config: hidden_size=256, num_attention_heads=2
    #   -> attention_head_size D = 128 (lane-dense fast path), seq=8, batch=2.
    B, H, S, D = 2, 2, 8, 128
    q = jax.random.normal(kq, (B, H, S, D), dtype=jnp.float32)
    k = jax.random.normal(kk, (B, H, S, D), dtype=jnp.float32)

    # f32 path: must match the reference tightly.
    q_out, k_out = rotary_embedding(q, k)
    jax.block_until_ready((q_out, k_out))
    q_ref, k_ref = _rope_reference(q, k)
    assert jnp.allclose(q_out, q_ref, atol=1e-5, rtol=1e-5)
    assert jnp.allclose(k_out, k_ref, atol=1e-5, rtol=1e-5)

    # bf16 I/O path (halves HBM bytes; in-kernel math stays f32, cast on store).
    qb, kb = q.astype(jnp.bfloat16), k.astype(jnp.bfloat16)
    qb_out, kb_out = rotary_embedding(qb, kb)
    jax.block_until_ready((qb_out, kb_out))
    qb_ref, kb_ref = _rope_reference(qb, kb)
    assert jnp.allclose(qb_out.astype(jnp.float32), qb_ref.astype(jnp.float32),
                        atol=5e-2, rtol=5e-2)
    assert jnp.allclose(kb_out.astype(jnp.float32), kb_ref.astype(jnp.float32),
                        atol=5e-2, rtol=5e-2)

    # Multi-tile path: bf16, longer sequence, small forced block target so the
    # grid is (n_seq=8, n_bh=2) -> exercises seq tiling, bf16-aware sublane
    # alignment and the table re-use across the inner fused-head axis.
    B2, H2, S2 = 2, 4, 512
    q3 = jax.random.normal(kq2, (B2, H2, S2, D), dtype=jnp.bfloat16)
    k3 = jax.random.normal(kk2, (B2, H2, S2, D), dtype=jnp.bfloat16)
    q3_out, k3_out = rotary_embedding(q3, k3, target_block_bytes=64 * 1024)
    jax.block_until_ready((q3_out, k3_out))
    q3_ref, k3_ref = _rope_reference(q3, k3)
    assert jnp.allclose(q3_out.astype(jnp.float32), q3_ref.astype(jnp.float32),
                        atol=5e-2, rtol=5e-2)
    assert jnp.allclose(k3_out.astype(jnp.float32), k3_ref.astype(jnp.float32),
                        atol=5e-2, rtol=5e-2)

    print("KERNEL_OK")
</pallas_src>

<mosaic_0001>
module attributes {stable_mosaic.version = 11 : i64} {
  func.func @_rope_kernel(%arg0: i32, %arg1: i32, %arg2: memref<2x8x128xf32, #tpu.memory_space<vmem>>, %arg3: memref<2x8x128xf32, #tpu.memory_space<vmem>>, %arg4: memref<2x8x128xf32, #tpu.memory_space<vmem>>, %arg5: memref<2x8x128xf32, #tpu.memory_space<vmem>>, %arg6: memref<2x8x128xf32, #tpu.memory_space<vmem>>) attributes {dimension_semantics = [#tpu.dimension_semantics<parallel>, #tpu.dimension_semantics<parallel>], iteration_bounds = array<i64: 1, 2>, scalar_prefetch = 0 : i64, scratch_operands = 0 : i64, tpu.core_type = #tpu.core_type<tc>, window_params = [{transform_indices = @transform_0, window_bounds = array<i64: 2, 8, 128>}, {transform_indices = @transform_1, window_bounds = array<i64: 2, 8, 128>}, {transform_indices = @transform_2, window_bounds = array<i64: 2, 8, 128>}, {transform_indices = @transform_3, window_bounds = array<i64: 2, 8, 128>}, {transform_indices = @transform_4, window_bounds = array<i64: 2, 8, 128>}]} {
    %c0 = arith.constant 0 : index
    %c0_0 = arith.constant 0 : index
    %c0_1 = arith.constant 0 : index
    %0 = vector.load %arg2[%c0, %c0_0, %c0_1] : memref<2x8x128xf32, #tpu.memory_space<vmem>>, vector<1x8x128xf32>
    %1 = vector.shape_cast %0 : vector<1x8x128xf32> to vector<8x128xf32>
    %c1 = arith.constant 1 : index
    %c0_2 = arith.constant 0 : index
    %c0_3 = arith.constant 0 : index
    %2 = vector.load %arg2[%c1, %c0_2, %c0_3] : memref<2x8x128xf32, #tpu.memory_space<vmem>>, vector<1x8x128xf32>
    %3 = vector.shape_cast %2 : vector<1x8x128xf32> to vector<8x128xf32>
    %c0_4 = arith.constant 0 : index
    %c0_5 = arith.constant 0 : index
    %c0_6 = arith.constant 0 : index
    %4 = vector.load %arg3[%c0_4, %c0_5, %c0_6] : memref<2x8x128xf32, #tpu.memory_space<vmem>>, vector<2x8x128xf32>
    %c64_i32 = arith.constant 64 : i32
    %5 = tpu.dynamic_rotate %4 by %c64_i32 dim 2 : vector<2x8x128xf32>, i32 -> vector<2x8x128xf32>
    %6 = vector.shape_cast %1 : vector<8x128xf32> to vector<1x8x128xf32>
    %7 = vector.broadcast %6 : vector<1x8x128xf32> to vector<2x8x128xf32>
    %8 = arith.mulf %4, %7 : vector<2x8x128xf32>
    %9 = vector.shape_cast %3 : vector<8x128xf32> to vector<1x8x128xf32>
    %10 = vector.broadcast %9 : vector<1x8x128xf32> to vector<2x8x128xf32>
    %11 = arith.mulf %5, %10 : vector<2x8x128xf32>
    %12 = arith.addf %8, %11 : vector<2x8x128xf32>
    %c0_7 = arith.constant 0 : index
    %c0_8 = arith.constant 0 : index
    %c0_9 = arith.constant 0 : index
    %13 = vector.load %arg5[%c0_7, %c0_8, %c0_9] : memref<2x8x128xf32, #tpu.memory_space<vmem>>, vector<2x8x128xf32>
    tpu.vector_store %arg5[%c0_7, %c0_8, %c0_9], %12 {strides = array<i32>} : memref<2x8x128xf32, #tpu.memory_space<vmem>>, vector<2x8x128xf32>,
    %c0_10 = arith.constant 0 : index
    %c0_11 = arith.constant 0 : index
    %c0_12 = arith.constant 0 : index
    %14 = vector.load %arg4[%c0_10, %c0_11, %c0_12] : memref<2x8x128xf32, #tpu.memory_space<vmem>>, vector<2x8x128xf32>
    %c64_i32_13 = arith.constant 64 : i32
    %15 = tpu.dynamic_rotate %14 by %c64_i32_13 dim 2 : vector<2x8x128xf32>, i32 -> vector<2x8x128xf32>
    %16 = vector.shape_cast %1 : vector<8x128xf32> to vector<1x8x128xf32>
    %17 = vector.broadcast %16 : vector<1x8x128xf32> to vector<2x8x128xf32>
    %18 = arith.mulf %14, %17 : vector<2x8x128xf32>
    %19 = vector.shape_cast %3 : vector<8x128xf32> to vector<1x8x128xf32>
    %20 = vector.broadcast %19 : vector<1x8x128xf32> to vector<2x8x128xf32>
    %21 = arith.mulf %15, %20 : vector<2x8x128xf32>
    %22 = arith.addf %18, %21 : vector<2x8x128xf32>
    %c0_14 = arith.constant 0 : index
    %c0_15 = arith.constant 0 : index
    %c0_16 = arith.constant 0 : index
    %23 = vector.load %arg6[%c0_14, %c0_15, %c0_16] : memref<2x8x128xf32, #tpu.memory_space<vmem>>, vector<2x8x128xf32>
    tpu.vector_store %arg6[%c0_14, %c0_15, %c0_16], %22 {strides = array<i32>} : memref<2x8x128xf32, #tpu.memory_space<vmem>>, vector<2x8x128xf32>,
    return
  }
  func.func @transform_0(%arg0: i32, %arg1: i32) -> (i32, i32, i32) {
    %c0_i32 = arith.constant 0 : i32
    %c0_i32_0 = arith.constant 0 : i32
    %c0_i32_1 = arith.constant 0 : i32
    return %c0_i32, %arg0, %c0_i32_0 : i32, i32, i32
  }
  func.func @transform_1(%arg0: i32, %arg1: i32) -> (i32, i32, i32) {
    %c0_i32 = arith.constant 0 : i32
    %c0_i32_0 = arith.constant 0 : i32
    return %arg1, %arg0, %c0_i32 : i32, i32, i32
  }
  func.func @transform_2(%arg0: i32, %arg1: i32) -> (i32, i32, i32) {
    %c0_i32 = arith.constant 0 : i32
    %c0_i32_0 = arith.constant 0 : i32
    return %arg1, %arg0, %c0_i32 : i32, i32, i32
  }
  func.func @transform_3(%arg0: i32, %arg1: i32) -> (i32, i32, i32) {
    %c0_i32 = arith.constant 0 : i32
    %c0_i32_0 = arith.constant 0 : i32
    return %arg1, %arg0, %c0_i32 : i32, i32, i32
  }
  func.func @transform_4(%arg0: i32, %arg1: i32) -> (i32, i32, i32) {
    %c0_i32 = arith.constant 0 : i32
    %c0_i32_0 = arith.constant 0 : i32
    return %arg1, %arg0, %c0_i32 : i32, i32, i32
  }
}

</mosaic_0001>

<llo_original>
// kernel: rotary_embedding.1
$region0: #{rotary_embedding.1}
  #allocation0 [shape = 'u32[]', space=smem, size = 0x4, offset = 0x4, fixed_abs, tag = 'smem constant byte address 0x4 - core index']
  #allocation1 [shape = 'u32[144,128]{1,0:T(1,128)}', space=vmem, size = 0x12000, scoped, tag = 'internal scratch']
  %s0 = inlined_call_operand.hbm [shape: f32[2,8,128], index: 0, kind: input, shape index: {}]
  %s1 = inlined_call_operand.hbm [shape: f32[4,8,128], index: 1, kind: input, shape index: {}, may-alias: {1,3}]
  %s2 = inlined_call_operand.hbm [shape: f32[4,8,128], index: 2, kind: input, shape index: {}, may-alias: {2,4}]
  %s3 = inlined_call_operand.hbm [shape: f32[4,8,128], index: 3, kind: output, shape index: {0}, may-alias: {1,3}]
  %s4 = inlined_call_operand.hbm [shape: f32[4,8,128], index: 4, kind: output, shape index: {1}, may-alias: {2,4}]
  %5 = xla_tuple %s3, %s4
  %s6 = sld [smem:[#allocation0]]
  $region65: #{rotary_embedding.1} parent=0
    _
  %s8 = ssub.s32 1, %s6
  %s9 = scalar_select 0, %s8, %s6
  $region1: #{rotary_embedding.1} parent=0
    #allocation2 [shape = 'u8[8192]{0}', space=vmem, size = 0x2000, scoped, tag = 'input window, operand 0, single buffered']
    #allocation3 [shape = 's32[2]{0}', space=sflag, size = 0x8, scoped, tag = 'scoped memory for rotary_embedding.1']
    #allocation4 [shape = 's32[2]{0}', space=sflag, size = 0x8, scoped, tag = 'scoped memory for rotary_embedding.1']
    #allocation5 [shape = 'u8[16384]{0}', space=vmem, size = 0x4000, scoped, tag = 'input window, operand 1']
    #allocation6 [shape = 's32[2]{0}', space=sflag, size = 0x8, scoped, tag = 'scoped memory for rotary_embedding.1']
    #allocation7 [shape = 'u8[16384]{0}', space=vmem, size = 0x4000, scoped, tag = 'input window, operand 2']
    #allocation8 [shape = 'u8[16384]{0}', space=vmem, size = 0x4000, scoped, tag = 'output window, operand 0']
    #allocation9 [shape = 'u8[16384]{0}', space=vmem, size = 0x4000, scoped, tag = 'output window, operand 1']
    #allocation10 [shape = 's32[2]{0}', space=sflag, size = 0x8, scoped, tag = 'scoped memory for rotary_embedding.1']
    %10 = vsyncpa [#allocation3], 0
    %11 = vsyncpa [#allocation6], 0
    %s12 = scalar_lea.sflag [#allocation6], 1
    %13 = vsyncpa %s12, 0
    %14 = vsyncpa [#allocation4], 0
    %s15 = scalar_lea.sflag [#allocation4], 1
    %16 = vsyncpa %s15, 0
    %17 = vsyncpa [#allocation10], 0
    %s18 = scalar_lea.sflag [#allocation10], 1
    %19 = vsyncpa %s18, 0
    loop: start=0, step=1, limit=4
    $region2: #{rotary_embedding.1} parent=1 // loop_pre_header
      _
    $region3: #{rotary_embedding.1} parent=1 // loop_header
      %s21 = sphi 0, %s25
      %p22 = scmp.ge.s32.totalorder %s21, 4
      %s28 = sphi 0, %s40
      %s29 = sphi 0, %s36
      %s30 = sphi 0, %s28
      %s31 = sphi 0, %s29
      %s32 = sphi 0, %s30
      %s33 = sphi 0, %s31
      %s43 = sphi 0, %s45
      %s46 = sphi 0, %s43
      %s47 = sphi 0, %s46
      %s63 = sphi 0, %s47
      %s71 = sphi 0, %s73
      %s74 = sphi 0, %s71
      %s75 = sphi 0, %s74
      %s91 = sphi 0, %s75
      %s99 = sphi 0, %s101
      %s102 = sphi 0, %s99
      %s103 = sphi 0, %s102
      %s119 = sphi 0, %s103
      %s127 = sphi 0, %s129
      %s130 = sphi 0, %s127
      %s131 = sphi 0, %s130
      %s147 = sphi 0, %s131
      %s155 = sphi 0, %s157
      %s158 = sphi 0, %s155
      %s159 = sphi 0, %s158
      %s175 = sphi 0, %s159
    $region4: #{rotary_embedding.1} parent=1 // loop_header_branch
      %24 = sbr.rel (%p22) target = $region8
    $region5: #{rotary_embedding.1} parent=1 // loop_body
      %s26 = ssub.s32 %s21, 1
      %s27 = ssub.s32 %s21, 2
      %s34 = sadd.s32 1, %s29
      %p35 = scmp.ge.s32.totalorder %s34, 2
      %s36 = scalar_select %p35, 0, %s34
      %s37 = sadd.s32 1, %s28
      %s38 = scalar_select %p35, %s37, %s28
      %p39 = scmp.ge.s32.totalorder %s38, 1
      %s40 = scalar_select %p39, 0, %s38
      %s41 = ssub.s32 %s28, %s40
      %p42 = scmp.eq.s32.totalorder %s41, 0
      %s44 = sadd.s32 %s43, 1
      %s45 = scalar_select %p42, %s43, %s44
      %p48 = pneg %p42
      %p49 = scmp.eq.s32.totalorder %s21, 1
      %p50 = por %p48, %p49
      %p51 = scmp.ne.s32.totalorder %s43, %s46
      %p52 = scmp.eq.s32.totalorder %s21, 0
      %p53 = por %p51, %p52
      %p54 = scmp.ne.s32.totalorder %s43, %s46
      %p55 = scmp.eq.s32.totalorder %s26, 1
      %p56 = por %p54, %p55
      %p57 = scmp.ne.s32.totalorder %s46, %s47
      %p58 = scmp.eq.s32.totalorder %s26, 0
      %p59 = por %p57, %p58
      %p60 = scmp.ne.s32.totalorder %s46, %s47
      %p61 = scmp.eq.s32.totalorder %s27, 1
      %p62 = por %p60, %p61
      %p64 = scmp.ne.s32.totalorder %s47, %s63
      %p65 = scmp.eq.s32.totalorder %s27, 0
      %p66 = por %p64, %p65
      %s67 = ssub.s32 %s29, %s36
      %s68 = ssub.s32 %s28, %s40
      %s69 = sor.u32 %s67, %s68
      %p70 = scmp.eq.s32.totalorder %s69, 0
      %s72 = sadd.s32 %s71, 1
      %s73 = scalar_select %p70, %s71, %s72
      %p76 = pneg %p70
      %p77 = scmp.eq.s32.totalorder %s21, 1
      %p78 = por %p76, %p77
      %p79 = scmp.ne.s32.totalorder %s71, %s74
      %p80 = scmp.eq.s32.totalorder %s21, 0
      %p81 = por %p79, %p80
      %p82 = scmp.ne.s32.totalorder %s71, %s74
      %p83 = scmp.eq.s32.totalorder %s26, 1
      %p84 = por %p82, %p83
      %p85 = scmp.ne.s32.totalorder %s74, %s75
      %p86 = scmp.eq.s32.totalorder %s26, 0
      %p87 = por %p85, %p86
      %p88 = scmp.ne.s32.totalorder %s74, %s75
      %p89 = scmp.eq.s32.totalorder %s27, 1
      %p90 = por %p88, %p89
      %p92 = scmp.ne.s32.totalorder %s75, %s91
      %p93 = scmp.eq.s32.totalorder %s27, 0
      %p94 = por %p92, %p93
      %s95 = ssub.s32 %s29, %s36
      %s96 = ssub.s32 %s28, %s40
      %s97 = sor.u32 %s95, %s96
      %p98 = scmp.eq.s32.totalorder %s97, 0
      %s100 = sadd.s32 %s99, 1
      %s101 = scalar_select %p98, %s99, %s100
      %p104 = pneg %p98
      %p105 = scmp.eq.s32.totalorder %s21, 1
      %p106 = por %p104, %p105
      %p107 = scmp.ne.s32.totalorder %s99, %s102
      %p108 = scmp.eq.s32.totalorder %s21, 0
      %p109 = por %p107, %p108
      %p110 = scmp.ne.s32.totalorder %s99, %s102
      %p111 = scmp.eq.s32.totalorder %s26, 1
      %p112 = por %p110, %p111
      %p113 = scmp.ne.s32.totalorder %s102, %s103
      %p114 = scmp.eq.s32.totalorder %s26, 0
      %p115 = por %p113, %p114
      %p116 = scmp.ne.s32.totalorder %s102, %s103
      %p117 = scmp.eq.s32.totalorder %s27, 1
      %p118 = por %p116, %p117
      %p120 = scmp.ne.s32.totalorder %s103, %s119
      %p121 = scmp.eq.s32.totalorder %s27, 0
      %p122 = por %p120, %p121
      %s123 = ssub.s32 %s29, %s36
      %s124 = ssub.s32 %s28, %s40
      %s125 = sor.u32 %s123, %s124
      %p126 = scmp.eq.s32.totalorder %s125, 0
      %s128 = sadd.s32 %s127, 1
      %s129 = scalar_select %p126, %s127, %s128
      %p132 = pneg %p126
      %p133 = scmp.eq.s32.totalorder %s21, 1
      %p134 = por %p132, %p133
      %p135 = scmp.ne.s32.totalorder %s127, %s130
      %p136 = scmp.eq.s32.totalorder %s21, 0
      %p137 = por %p135, %p136
      %p138 = scmp.ne.s32.totalorder %s127, %s130
      %p139 = scmp.eq.s32.totalorder %s26, 1
      %p140 = por %p138, %p139
      %p141 = scmp.ne.s32.totalorder %s130, %s131
      %p142 = scmp.eq.s32.totalorder %s26, 0
      %p143 = por %p141, %p142
      %p144 = scmp.ne.s32.totalorder %s130, %s131
      %p145 = scmp.eq.s32.totalorder %s27, 1
      %p146 = por %p144, %p145
      %p148 = scmp.ne.s32.totalorder %s131, %s147
      %p149 = scmp.eq.s32.totalorder %s27, 0
      %p150 = por %p148, %p149
      %s151 = ssub.s32 %s29, %s36
      %s152 = ssub.s32 %s28, %s40
      %s153 = sor.u32 %s151, %s152
      %p154 = scmp.eq.s32.totalorder %s153, 0
      %s156 = sadd.s32 %s155, 1
      %s157 = scalar_select %p154, %s155, %s156
      %p160 = pneg %p154
      %p161 = scmp.eq.s32.totalorder %s21, 1
      %p162 = por %p160, %p161
      %p163 = scmp.ne.s32.totalorder %s155, %s158
      %p164 = scmp.eq.s32.totalorder %s21, 0
      %p165 = por %p163, %p164
      %p166 = scmp.ne.s32.totalorder %s155, %s158
      %p167 = scmp.eq.s32.totalorder %s26, 1
      %p168 = por %p166, %p167
      %p169 = scmp.ne.s32.totalorder %s158, %s159
      %p170 = scmp.eq.s32.totalorder %s26, 0
      %p171 = por %p169, %p170
      %p172 = scmp.ne.s32.totalorder %s158, %s159
      %p173 = scmp.eq.s32.totalorder %s27, 1
      %p174 = por %p172, %p173
      %p176 = scmp.ne.s32.totalorder %s159, %s175
      %p177 = scmp.eq.s32.totalorder %s27, 0
      %p178 = por %p176, %p177
      %p179 = scmp.le.s32.totalorder 1, %s21
      %p180 = scmp.lt.s32.totalorder %s21, 3
      %p181 = pnand %p179, %p180
      %p182 = pneg %p181
      // Predicated region
      $region9: #{rotary_embedding.1} parent=5 // pred_check
        _
      $region10: #{rotary_embedding.1} parent=5 // pred_check_branch
        %184 = sbr.rel (%p181) target = $region12
      $region11: #{rotary_embedding.1} parent=5 // pred_region
        %s185 = ssub.s32 %s21, 1
        // Predicated region
        $region13: #{rotary_embedding.1} parent=11 // pred_check
          %p186 = pneg %p59
        $region14: #{rotary_embedding.1} parent=11 // pred_check_branch
          %188 = sbr.rel (%p186) target = $region16
        $region15: #{rotary_embedding.1} parent=11 // pred_region
          %s190 = ssub.s32 256, 256
          %191 = vsyncadd [#allocation3], %s190
          %s192 = smul.addr %s30, 128
          %s193 = scalar_lea.hbm %s0, %s192
          %s194 = sshll.u32 [#allocation2], 4
          %s195 = int_to_ptr.vmem [resolvable:$true] %s194
          %200 = dma.hbm_to_vmem [thread:$0]  %s193, 256, %s195, [#allocation3], 128, 128, 8
        $region16: #{rotary_embedding.1} parent=11 // pred_fallthru
          _
      $region12: #{rotary_embedding.1} parent=5 // pred_fallthru
        _
      %p201 = scmp.lt.s32.totalorder %s21, 2
      // Predicated region
      $region17: #{rotary_embedding.1} parent=5 // pred_check
        %p202 = pneg %p201
      $region18: #{rotary_embedding.1} parent=5 // pred_check_branch
        %204 = sbr.rel (%p202) target = $region20
      $region19: #{rotary_embedding.1} parent=5 // pred_region
        // Predicated region
        $region21: #{rotary_embedding.1} parent=19 // pred_check
          %p205 = pneg %p81
        $region22: #{rotary_embedding.1} parent=19 // pred_check_branch
          %207 = sbr.rel (%p205) target = $region24
        $region23: #{rotary_embedding.1} parent=19 // pred_region
          %s208 = sand.u32 %s21, 1
          %s209 = scalar_lea.sflag [#allocation6], %s208
          %s210 = sand.u32 %s71, 1
          %s211 = smul.addr %s210, 16
          %s212 = scalar_lea.vmem [#allocation5], %s211
          %s213 = smul.u32 2, %s29
          %s215 = ssub.s32 256, 256
          %216 = vsyncadd %s209, %s215
          %s217 = sadd.s32 %s28, %s213
          %s218 = smul.addr %s217, 128
          %s219 = scalar_lea.hbm %s1, %s218
          %s220 = sshll.u32 %s212, 4
          %s221 = int_to_ptr.vmem [resolvable:$true] %s220
          %226 = dma.hbm_to_vmem [thread:$0]  %s219, 256, %s221, %s209, 128, 128, 8
        $region24: #{rotary_embedding.1} parent=19 // pred_fallthru
          _
        // Predicated region
        $region25: #{rotary_embedding.1} parent=19 // pred_check
          %p227 = pneg %p109
        $region26: #{rotary_embedding.1} parent=19 // pred_check_branch
          %229 = sbr.rel (%p227) target = $region28
        $region27: #{rotary_embedding.1} parent=19 // pred_region
          %s230 = sand.u32 %s21, 1
          %s231 = scalar_lea.sflag [#allocation6], %s230
          %s232 = sand.u32 %s99, 1
          %s233 = smul.addr %s232, 16
          %s234 = scalar_lea.vmem [#allocation7], %s233
          %s235 = smul.u32 2, %s29
          %s237 = ssub.s32 256, 256
          %238 = vsyncadd %s231, %s237
          %s239 = sadd.s32 %s28, %s235
          %s240 = smul.addr %s239, 128
          %s241 = scalar_lea.hbm %s2, %s240
          %s242 = sshll.u32 %s234, 4
          %s243 = int_to_ptr.vmem [resolvable:$true] %s242
          %248 = dma.hbm_to_vmem [thread:$0]  %s241, 256, %s243, %s231, 128, 128, 8
        $region28: #{rotary_embedding.1} parent=19 // pred_fallthru
          _
      $region20: #{rotary_embedding.1} parent=5 // pred_fallthru
        _
      %p249 = scmp.le.s32.totalorder 1, %s21
      %p250 = scmp.lt.s32.totalorder %s21, 3
      %p251 = pnand %p249, %p250
      %p252 = pneg %p251
      // Predicated region
      $region29: #{rotary_embedding.1} parent=5 // pred_check
        _
      $region30: #{rotary_embedding.1} parent=5 // pred_check_branch
        %254 = sbr.rel (%p251) target = $region32
      $region31: #{rotary_embedding.1} parent=5 // pred_region
        %s255 = ssub.s32 %s21, 1
        // Predicated region
        $region33: #{rotary_embedding.1} parent=31 // pred_check
          %p256 = pneg %p59
        $region34: #{rotary_embedding.1} parent=31 // pred_check_branch
          %258 = sbr.rel (%p256) target = $region36
        $region35: #{rotary_embedding.1} parent=31 // pred_region
          %259 = dma.done [#allocation3], 256
        $region36: #{rotary_embedding.1} parent=31 // pred_fallthru
          _
        %s260 = sand.u32 %s26, 1
        %s261 = scalar_lea.sflag [#allocation6], %s260
        %s262 = sand.u32 %s74, 1
        %s263 = smul.addr %s262, 16
        %s264 = scalar_lea.vmem [#allocation5], %s263
        // Predicated region
        $region37: #{rotary_embedding.1} parent=31 // pred_check
          %p265 = pneg %p87
        $region38: #{rotary_embedding.1} parent=31 // pred_check_branch
          %267 = sbr.rel (%p265) target = $region40
        $region39: #{rotary_embedding.1} parent=31 // pred_region
          %268 = dma.done %s261, 256
        $region40: #{rotary_embedding.1} parent=31 // pred_fallthru
          _
        %s269 = sand.u32 %s26, 1
        %s270 = scalar_lea.sflag [#allocation6], %s269
        %s271 = sand.u32 %s102, 1
        %s272 = smul.addr %s271, 16
        %s273 = scalar_lea.vmem [#allocation7], %s272
        // Predicated region
        $region41: #{rotary_embedding.1} parent=31 // pred_check
          %p274 = pneg %p115
        $region42: #{rotary_embedding.1} parent=31 // pred_check_branch
          %276 = sbr.rel (%p274) target = $region44
        $region43: #{rotary_embedding.1} parent=31 // pred_region
          %277 = dma.done %s270, 256
        $region44: #{rotary_embedding.1} parent=31 // pred_fallthru
          _
        %p278 = pneg %p59
        %p279 = pneg %p56
        %s280 = sand.u32 %s26, 1
        %s281 = scalar_lea.sflag [#allocation6], %s280
        %s282 = sand.u32 %s74, 1
        %s283 = smul.addr %s282, 16
        %s284 = scalar_lea.vmem [#allocation5], %s283
        %p285 = pneg %p87
        %p286 = pneg %p84
        %s287 = sand.u32 %s26, 1
        %s288 = scalar_lea.sflag [#allocation6], %s287
        %s289 = sand.u32 %s102, 1
        %s290 = smul.addr %s289, 16
        %s291 = scalar_lea.vmem [#allocation7], %s290
        %p292 = pneg %p115
        %p293 = pneg %p112
        %p294 = pneg %p143
        %p295 = pneg %p140
        %s296 = sand.u32 %s130, 1
        %s297 = scalar_lea.sflag [#allocation4], %s296
        %s298 = sand.u32 %s130, 1
        %s299 = smul.addr %s298, 16
        %s300 = scalar_lea.vmem [#allocation8], %s299
        %p301 = pneg %p171
        %p302 = pneg %p168
        %s303 = sand.u32 %s158, 1
        %s304 = scalar_lea.sflag [#allocation10], %s303
        %s305 = sand.u32 %s158, 1
        %s306 = smul.addr %s305, 16
        %s307 = scalar_lea.vmem [#allocation9], %s306
        %s308 = smul.u32 2, %s31
        %s309 = smul.u32 2, %s31
        %s310 = smul.u32 2, %s31
        %s311 = smul.u32 2, %s31
        %v312 = vld [vmem:[#allocation2] sm:$0xff]
        %s313 = scalar_lea.vmem [#allocation2], 8
        %v314 = vld [vmem:[%s313] sm:$0xff]
        %v315 = vld [vmem:[%s264] sm:$0xff]
        %v316 = vld [vmem:[%s264 + $0x8] sm:$0xff]
        %317 = vrot.lane.b32.xlu0 %v315, 64
        %v318 = vpop.permute.xlu0 %317
        %319 = vrot.lane.b32.xlu0 %v316, 64
        %v320 = vpop.permute.xlu0 %319
        %v321 = vmul.f32 %v315, %v312
        %v322 = vmul.f32 %v316, %v312
        %v323 = vmul.f32 %v318, %v314
        %v324 = vmul.f32 %v320, %v314
        %v325 = vadd.f32 %v321, %v323
        %v326 = vadd.f32 %v322, %v324
        %327 = vst [vmem:[%s300] sm:$0xff] %v325
        %328 = vst [vmem:[%s300 + $0x8] sm:$0xff] %v326
        %v329 = vld [vmem:[%s273] sm:$0xff]
        %v330 = vld [vmem:[%s273 + $0x8] sm:$0xff]
        %331 = vrot.lane.b32.xlu0 %v329, 64
        %v332 = vpop.permute.xlu0 %331
        %333 = vrot.lane.b32.xlu0 %v330, 64
        %v334 = vpop.permute.xlu0 %333
        %v335 = vmul.f32 %v329, %v312
        %v336 = vmul.f32 %v330, %v312
        %v337 = vmul.f32 %v332, %v314
        %v338 = vmul.f32 %v334, %v314
        %v339 = vadd.f32 %v335, %v337
        %v340 = vadd.f32 %v336, %v338
        %341 = vst [vmem:[%s307] sm:$0xff] %v339
        %342 = vst [vmem:[%s307 + $0x8] sm:$0xff] %v340
        %s343 = sand.u32 %s130, 1
        %s344 = scalar_lea.sflag [#allocation4], %s343
        %s345 = sand.u32 %s130, 1
        %s346 = smul.addr %s345, 16
        %s347 = scalar_lea.vmem [#allocation8], %s346
        %s348 = sand.u32 %s158, 1
        %s349 = scalar_lea.sflag [#allocation10], %s348
        %s350 = sand.u32 %s158, 1
        %s351 = smul.addr %s350, 16
        %s352 = scalar_lea.vmem [#allocation9], %s351
        // Predicated region
        $region45: #{rotary_embedding.1} parent=31 // pred_check
          %p353 = pneg %p140
        $region46: #{rotary_embedding.1} parent=31 // pred_check_branch
          %355 = sbr.rel (%p353) target = $region48
        $region47: #{rotary_embedding.1} parent=31 // pred_region
          %s356 = smul.u32 2, %s31
          %s358 = ssub.s32 256, 256
          %359 = vsyncadd %s344, %s358
          %s360 = sadd.s32 %s30, %s356
          %s361 = smul.addr %s360, 128
          %s362 = scalar_lea.hbm %s3, %s361
          %s363 = sshll.u32 %s347, 4
          %s364 = int_to_ptr.vmem [resolvable:$true] %s363
          %369 = dma.vmem_to_hbm [thread:$0]  %s364, 256, %s362, %s344, 128, 128, 8
        $region48: #{rotary_embedding.1} parent=31 // pred_fallthru
          _
        // Predicated region
        $region49: #{rotary_embedding.1} parent=31 // pred_check
          %p370 = pneg %p168
        $region50: #{rotary_embedding.1} parent=31 // pred_check_branch
          %372 = sbr.rel (%p370) target = $region52
        $region51: #{rotary_embedding.1} parent=31 // pred_region
          %s373 = smul.u32 2, %s31
          %s375 = ssub.s32 256, 256
          %376 = vsyncadd %s349, %s375
          %s377 = sadd.s32 %s30, %s373
          %s378 = smul.addr %s377, 128
          %s379 = scalar_lea.hbm %s4, %s378
          %s380 = sshll.u32 %s352, 4
          %s381 = int_to_ptr.vmem [resolvable:$true] %s380
          %386 = dma.vmem_to_hbm [thread:$0]  %s381, 256, %s379, %s349, 128, 128, 8
        $region52: #{rotary_embedding.1} parent=31 // pred_fallthru
          _
      $region32: #{rotary_embedding.1} parent=5 // pred_fallthru
        _
      %p387 = scmp.le.s32.totalorder 2, %s21
      // Predicated region
      $region53: #{rotary_embedding.1} parent=5 // pred_check
        %p388 = pneg %p387
      $region54: #{rotary_embedding.1} parent=5 // pred_check_branch
        %390 = sbr.rel (%p388) target = $region56
      $region55: #{rotary_embedding.1} parent=5 // pred_region
        %s391 = ssub.s32 %s21, 2
        // Predicated region
        $region57: #{rotary_embedding.1} parent=55 // pred_check
          %p392 = pneg %p146
        $region58: #{rotary_embedding.1} parent=55 // pred_check_branch
          %394 = sbr.rel (%p392) target = $region60
        $region59: #{rotary_embedding.1} parent=55 // pred_region
          %s395 = sand.u32 %s131, 1
          %s396 = scalar_lea.sflag [#allocation4], %s395
          %s397 = sand.u32 %s131, 1
          %s398 = smul.addr %s397, 16
          %s399 = scalar_lea.vmem [#allocation8], %s398
          %400 = dma.done %s396, 256
        $region60: #{rotary_embedding.1} parent=55 // pred_fallthru
          _
        // Predicated region
        $region61: #{rotary_embedding.1} parent=55 // pred_check
          %p401 = pneg %p174
        $region62: #{rotary_embedding.1} parent=55 // pred_check_branch
          %403 = sbr.rel (%p401) target = $region64
        $region63: #{rotary_embedding.1} parent=55 // pred_region
          %s404 = sand.u32 %s159, 1
          %s405 = scalar_lea.sflag [#allocation10], %s404
          %s406 = sand.u32 %s159, 1
          %s407 = smul.addr %s406, 16
          %s408 = scalar_lea.vmem [#allocation9], %s407
          %409 = dma.done %s405, 256
        $region64: #{rotary_embedding.1} parent=55 // pred_fallthru
          _
      $region56: #{rotary_embedding.1} parent=5 // pred_fallthru
        _
    $region6: #{rotary_embedding.1} parent=1 // loop_footer
      %s25 = sadd.s32 1, %s21
    $region7: #{rotary_embedding.1} parent=1 // loop_footer_branch
      %20 = sbr.rel target = $region3
    $region8: #{rotary_embedding.1} parent=1 // loop_exit
      _
    %410 = vsyncpa [#allocation3], 1
    %s411 = scalar_lea.sflag [#allocation3], 1
    %412 = vsyncpa %s411, 1
    %413 = vsyncpa [#allocation6], 1
    %s414 = scalar_lea.sflag [#allocation6], 1
    %415 = vsyncpa %s414, 1
    %416 = vsyncpa [#allocation4], 1
    %s417 = scalar_lea.sflag [#allocation4], 1
    %418 = vsyncpa %s417, 1
    %419 = vsyncpa [#allocation10], 1
    %s420 = scalar_lea.sflag [#allocation10], 1
    %421 = vsyncpa %s420, 1

</llo_original>
